<compile_context>
chip_gen: v7x
topology: tpu7x:2x2x1
jax: 0.10.0
libtpu: 0.0.40
codegen_flags: <defaults>
</compile_context>

<pallas_src>
import numpy as np
import jax
import jax.numpy as jnp
from jax.experimental import pallas as pl
from jax.experimental.pallas import tpu as pltpu

_LANES = 128
_SUBLANES = 8
_ROW_ALIGN = 16          # multiple of 8 (f32 tiling) and 16 (bf16 packing)
_MIN_ROWS = 16           # smallest problem the lane-dense kernel will take


def _cdiv(a, b):
    return -(-a // b)


def _round_up(x, m):
    return _cdiv(x, m) * m


_NUM_TC_SPLITS_CACHE = None


def _num_tc_splits():
    """2-way 'parallel' split only on chips with >1 TensorCore per device."""
    global _NUM_TC_SPLITS_CACHE
    if _NUM_TC_SPLITS_CACHE is None:
        kind = ""
        try:
            kind = jax.devices()[0].device_kind.lower()
        except Exception:
            kind = ""
        multi_tc = any(t in kind for t in ("v4", "v5p", "v7")) and "lite" not in kind
        _NUM_TC_SPLITS_CACHE = 2 if multi_tc else 1
    return _NUM_TC_SPLITS_CACHE


def _make_wmape_kernel(tile_rows, steps, valid_rows, needs_mask):
    """Kernel over (tile_rows, 128) data blocks.

    Grid is (split, step) with dimension_semantics ("parallel", "arbitrary").
    Outputs are per-split (1, 8, 128) UNWEIGHTED per-lane accumulators that
    stay resident across the "arbitrary" axis (output-as-accumulator).
    """

    def kernel(x_ref, a_ref, mape_ref, mse_ref):
        t = pl.program_id(1)

        @pl.when(t == 0)
        def _init():
            mape_ref[...] = jnp.zeros_like(mape_ref)
            mse_ref[...] = jnp.zeros_like(mse_ref)

        x = x_ref[...].astype(jnp.float32)          # (tile_rows, 128)
        a = a_ref[...].astype(jnp.float32)

        diff = x - a
        abs_err = jnp.abs(diff)
        denom = jnp.maximum(jnp.abs(a), 1e-6)       # clamp(min=1e-6)
        # EUP approx reciprocal + one Newton step (~f32-exact, off the VALU).
        inv = pl.reciprocal(denom, approx=True)
        inv = inv * (2.0 - denom * inv)

        mape_t = abs_err * inv                      # unweighted terms
        mse_t = diff * diff

        if needs_mask:
            # Static tail mask: rows past the real array end (partial last
            # block / clamped duplicate blocks) must contribute exactly 0.
            s = pl.program_id(0)
            row0 = (s * steps + t) * tile_rows
            rows = jax.lax.broadcasted_iota(jnp.int32, (tile_rows, _LANES), 0) + row0
            valid = rows < valid_rows
            mape_t = jnp.where(valid, mape_t, 0.0)
            mse_t = jnp.where(valid, mse_t, 0.0)

        # Deferred reduction: fold the tile into a vreg-shaped (8,128) partial
        # (pure VPU adds; reshape is (8,128)-tile aligned hence free) and add
        # into the resident per-split output block.
        mape_ref[...] += jnp.sum(mape_t.reshape(-1, _SUBLANES, _LANES), axis=0)[None]
        mse_ref[...] += jnp.sum(mse_t.reshape(-1, _SUBLANES, _LANES), axis=0)[None]

    return kernel


def _weighted_sums_pallas(x2, a2, w_row, max_tile_rows, min_steps=4):
    """x2/a2: (R, 128) lane-dense views (f32 or bf16) of the same flat data.

    w_row: numpy (128,) per-lane weights (0.0 on masked/history lanes).
    Returns (sum(w * |err| / clamp(|a|)), sum(w * err^2)) as f32 scalars.
    """
    R, lanes = x2.shape
    assert lanes == _LANES

    S = _num_tc_splits()

    max_tile_rows = max(_ROW_ALIGN, (int(max_tile_rows) // _ROW_ALIGN) * _ROW_ALIGN)
    tile_rows = min(max_tile_rows, _round_up(_cdiv(R, S * min_steps), _ROW_ALIGN))
    nb = _cdiv(R, tile_rows)            # blocks that actually contain data
    steps = _cdiv(nb, S)                # inner ("arbitrary") steps per split
    needs_mask = (S * steps * tile_rows != R)

    if S * steps > nb:
        # At most one duplicate block per run: clamp so the DMA stays in
        # bounds; its rows are >= R so the in-kernel mask zeroes it out.
        data_index = lambda s, t: (jnp.minimum(s * steps + t, nb - 1), 0)
    else:
        data_index = lambda s, t: (s * steps + t, 0)

    data_spec = pl.BlockSpec((tile_rows, _LANES), data_index)
    out_spec = pl.BlockSpec((1, _SUBLANES, _LANES), lambda s, t: (s, 0, 0))

    n_elems = R * _LANES
    cost = pl.CostEstimate(
        flops=10 * n_elems,
        transcendentals=n_elems,
        bytes_accessed=2 * n_elems * x2.dtype.itemsize + 2 * S * _SUBLANES * _LANES * 4,
    )

    kernel = _make_wmape_kernel(tile_rows, steps, R, needs_mask)

    mape_parts, mse_parts = pl.pallas_call(
        kernel,
        out_shape=(
            jax.ShapeDtypeStruct((S, _SUBLANES, _LANES), jnp.float32),
            jax.ShapeDtypeStruct((S, _SUBLANES, _LANES), jnp.float32),
        ),
        grid_spec=pltpu.PrefetchScalarGridSpec(
            num_scalar_prefetch=0,
            grid=(S, steps),
            in_specs=[data_spec, data_spec],
            out_specs=[out_spec, out_spec],
        ),
        compiler_params=pltpu.CompilerParams(
            dimension_semantics=("parallel", "arbitrary"),
            vmem_limit_bytes=32 * 1024 * 1024,
        ),
        cost_estimate=cost,
    )(x2, a2)

    # Fused JAX epilogue on S*8*128 partials: lane-only weight multiply
    # (also drops the zero-weighted history lanes) + final reduce.
    w_j = jnp.asarray(w_row, jnp.float32)
    mape_sum = jnp.sum(mape_parts * w_j[None, None, :])
    mse_sum = jnp.sum(mse_parts * w_j[None, None, :])
    return mape_sum, mse_sum


class WeightedMAPE:
    """JAX/Pallas port of the PyTorch WeightedMAPE criterion."""

    def __init__(self, window_length, history_length, alpha_mse: float = 0.0,
                 max_epoch: int = 50, min_pallas_elements: int = 1 << 15,
                 max_tile_rows: int = 4096):
        self.window_length = window_length
        self.pred_length = window_length - history_length
        start_value = 1.0001
        end_value = 1.1999
        # Same values as torch.linspace(0, 1, pred_length) * (end-start) + start.
        self.weights_np = (
            np.linspace(0.0, 1.0, self.pred_length, dtype=np.float32)
            * (end_value - start_value) + start_value
        ).astype(np.float32)
        self.alpha_mse = alpha_mse
        self.max_epoch = max_epoch
        self.min_pallas_elements = min_pallas_elements
        self.max_tile_rows = max_tile_rows
        # Jit the (epoch-independent) loss sums so reshapes/slices fuse and
        # the tiny epilogue doesn't cost extra dispatches.
        self._losses = jax.jit(self._losses_impl)

    # ------------------------------------------------------------------ #

    def _losses_impl(self, logits, annots):
        P = self.pred_length
        B, C, H, W = logits.shape
        M = B * C * H
        sum_w = float(np.sum(self.weights_np))

        # Keep bf16 native (half HBM traffic); everything else computes in f32.
        if logits.dtype == jnp.bfloat16 and annots.dtype == jnp.bfloat16:
            compute_dtype = jnp.bfloat16
        else:
            compute_dtype = jnp.float32
        x = logits.astype(compute_dtype)
        a = annots.astype(compute_dtype)

        # Path 1: full un-sliced tensor, history lanes weighted 0.0.
        use_full = (
            _LANES % W == 0
            and (M * W) % _LANES == 0
            and (M * W) // _LANES >= _MIN_ROWS
            and (M * W) >= self.min_pallas_elements
            and W <= 3 * P        # otherwise slicing (even with its copy) reads less
        )
        # Path 2: materialized trailing-window slice (only when history >> pred).
        use_sliced = (
            _LANES % P == 0
            and (M * P) % _LANES == 0
            and (M * P) // _LANES >= _MIN_ROWS
            and (M * P) >= self.min_pallas_elements
        )

        if use_full:
            w_pattern = np.concatenate(
                [np.zeros(W - P, np.float32), self.weights_np]).astype(np.float32)
            w_row = np.tile(w_pattern, _LANES // W)
            x2 = x.reshape((M * W) // _LANES, _LANES)    # free contiguous reshape
            a2 = a.reshape((M * W) // _LANES, _LANES)
            mape_sum, mse_sum = _weighted_sums_pallas(
                x2, a2, w_row, self.max_tile_rows)
        elif use_sliced:
            # TODO(synk): this path still materializes the window slice (one
            # extra HBM pass); it is only taken when history >> prediction so
            # the sliced traffic is still lower than reading the full tensor.
            xs = x[..., -P:]
            as_ = a[..., -P:]
            w_row = np.tile(self.weights_np, _LANES // P)
            x2 = xs.reshape((M * P) // _LANES, _LANES)
            a2 = as_.reshape((M * P) // _LANES, _LANES)
            mape_sum, mse_sum = _weighted_sums_pallas(
                x2, a2, w_row, self.max_tile_rows)
        else:
            # Tiny problems (kernel launch dominates) or shapes the lane-dense
            # kernel cannot view for free: plain-JAX, mathematically identical.
            xs = x[..., -P:].astype(jnp.float32)
            as_ = a[..., -P:].astype(jnp.float32)
            w = jnp.asarray(self.weights_np)
            diff = xs - as_
            mape_sum = jnp.sum(jnp.abs(diff) / jnp.maximum(jnp.abs(as_), 1e-6) * w)
            mse_sum = jnp.sum(diff * diff * w)

        mape_loss = mape_sum / (sum_w * M)   # mean over rows of (row_sum / sum_w)
        mse_loss = mse_sum / (sum_w * M)
        return mape_loss, mse_loss

    # ------------------------------------------------------------------ #

    def __call__(self, logits, annots, epoch=None):
        MAPE_loss, MSE_loss = self._losses(logits, annots)

        # Matches the PyTorch module's `if epoch:` (epoch None or 0 -> alpha_mse).
        if epoch:
            _alpha = (1 - min(1, max(1, epoch) / self.max_epoch)) * self.alpha_mse
        else:
            _alpha = self.alpha_mse
        hybrid = MSE_loss * _alpha + MAPE_loss * (1 - _alpha)
        return {"MAPE": MAPE_loss, "MSE": MSE_loss, "hybrid": hybrid}


# ---------------------------------------------------------------------- #
# Pure-JAX reference (mirrors the PyTorch forward exactly).
# ---------------------------------------------------------------------- #

def _reference(logits, annots, weights, pred_length, alpha_mse, max_epoch, epoch=None):
    logits = logits[:, :, :, -pred_length:]
    annots = annots[:, :, :, -pred_length:]
    abs_err = jnp.abs(logits - annots)
    mape = jnp.mean(
        jnp.sum(abs_err / jnp.maximum(jnp.abs(annots), 1e-6) * weights, axis=3)
        / jnp.sum(weights))
    mse = jnp.mean(
        jnp.sum((logits - annots) ** 2 * weights, axis=3) / jnp.sum(weights))
    if epoch:
        alpha = (1 - min(1, max(1, epoch) / max_epoch)) * alpha_mse
    else:
        alpha = alpha_mse
    return mape, mse, mse * alpha + mape * (1 - alpha)


def _check(loss_dict, ref_tuple, rtol=1e-5, atol=1e-6):
    np.testing.assert_allclose(np.asarray(loss_dict["MAPE"]), np.asarray(ref_tuple[0]),
                               rtol=rtol, atol=atol)
    np.testing.assert_allclose(np.asarray(loss_dict["MSE"]), np.asarray(ref_tuple[1]),
                               rtol=rtol, atol=atol)
    np.testing.assert_allclose(np.asarray(loss_dict["hybrid"]), np.asarray(ref_tuple[2]),
                               rtol=rtol, atol=atol)


if __name__ == "__main__":
    # Shapes consistent with the module: [B, C, H, W], W = window_length.
    B, C, H = 2, 4, 16
    window_length, history_length = 16, 8      # pred_length = 8
    alpha_mse = 0.3

    key = jax.random.PRNGKey(0)
    k1, k2, k3, k4, k5, k6 = jax.random.split(key, 6)

    # --- Test 1: baseline f32, full-tensor (zero-weighted history) path. ---
    logits = jax.random.normal(k1, (B, C, H, window_length), dtype=jnp.float32)
    annots = jax.random.normal(k2, (B, C, H, window_length), dtype=jnp.float32) + 2.0
    crit = WeightedMAPE(window_length, history_length, alpha_mse=alpha_mse,
                        max_epoch=50, min_pallas_elements=0)
    out1 = crit(logits, annots, epoch=None)
    jax.block_until_ready(out1["hybrid"])
    ref1 = _reference(logits, annots, jnp.asarray(crit.weights_np),
                      crit.pred_length, alpha_mse, crit.max_epoch, epoch=None)
    _check(out1, ref1)

    # --- Test 2: multi-step accumulation (small tiles) + epoch-scaled alpha. ---
    H2 = 64
    logits2 = jax.random.normal(k3, (B, C, H2, window_length), dtype=jnp.float32)
    annots2 = jax.random.normal(k4, (B, C, H2, window_length), dtype=jnp.float32) + 2.0
    crit2 = WeightedMAPE(window_length, history_length, alpha_mse=alpha_mse,
                         max_epoch=50, min_pallas_elements=0, max_tile_rows=32)
    out2 = crit2(logits2, annots2, epoch=10)
    jax.block_until_ready(out2["hybrid"])
    ref2 = _reference(logits2, annots2, jnp.asarray(crit2.weights_np),
                      crit2.pred_length, alpha_mse, crit2.max_epoch, epoch=10)
    _check(out2, ref2)

    # --- Test 3: row count not divisible by the tile -> in-kernel tail mask. ---
    H3 = 20                                    # rows = 2*4*20*16/128 = 20
    logits3 = jax.random.normal(k5, (B, C, H3, window_length), dtype=jnp.float32)
    annots3 = jax.random.normal(k6, (B, C, H3, window_length), dtype=jnp.float32) + 2.0
    crit3 = WeightedMAPE(window_length, history_length, alpha_mse=alpha_mse,
                         max_epoch=50, min_pallas_elements=0)
    out3 = crit3(logits3, annots3, epoch=None)
    jax.block_until_ready(out3["hybrid"])
    ref3 = _reference(logits3, annots3, jnp.asarray(crit3.weights_np),
                      crit3.pred_length, alpha_mse, crit3.max_epoch, epoch=None)
    _check(out3, ref3)

    # --- Test 4: native bf16 inputs (upcast happens inside the kernel). ---
    logits_bf = logits.astype(jnp.bfloat16)
    annots_bf = annots.astype(jnp.bfloat16)
    out4 = crit(logits_bf, annots_bf, epoch=None)
    jax.block_until_ready(out4["hybrid"])
    ref4 = _reference(logits_bf.astype(jnp.float32), annots_bf.astype(jnp.float32),
                      jnp.asarray(crit.weights_np), crit.pred_length, alpha_mse,
                      crit.max_epoch, epoch=None)
    _check(out4, ref4, rtol=1e-4, atol=1e-6)

    print("KERNEL_OK")
</pallas_src>

<mosaic_0001>
module attributes {stable_mosaic.version = 11 : i64} {
  func.func @kernel(%arg0: i32, %arg1: i32, %arg2: memref<16x128xf32, #tpu.memory_space<vmem>>, %arg3: memref<16x128xf32, #tpu.memory_space<vmem>>, %arg4: memref<1x8x128xf32, #tpu.memory_space<vmem>>, %arg5: memref<1x8x128xf32, #tpu.memory_space<vmem>>) attributes {dimension_semantics = [#tpu.dimension_semantics<parallel>, #tpu.dimension_semantics<arbitrary>], iteration_bounds = array<i64: 1, 1>, scalar_prefetch = 0 : i64, scratch_operands = 0 : i64, tpu.core_type = #tpu.core_type<tc>, window_params = [{transform_indices = @transform_0, window_bounds = array<i64: 16, 128>}, {transform_indices = @transform_1, window_bounds = array<i64: 16, 128>}, {transform_indices = @transform_2, window_bounds = array<i64: 1, 8, 128>}, {transform_indices = @transform_3, window_bounds = array<i64: 1, 8, 128>}]} {
    %c0_i32 = arith.constant 0 : i32
    %0 = arith.cmpi eq, %arg1, %c0_i32 : i32
    %1 = arith.extui %0 : i1 to i32
    %c0_i32_0 = arith.constant 0 : i32
    %2 = arith.cmpi ne, %1, %c0_i32_0 : i32
    scf.if %2 {
      %cst_19 = arith.constant 0.000000e+00 : f32
      %29 = vector.broadcast %cst_19 : f32 to vector<1x8x128xf32>
      %c0_20 = arith.constant 0 : index
      %c0_21 = arith.constant 0 : index
      %c0_22 = arith.constant 0 : index
      %30 = vector.load %arg4[%c0_20, %c0_21, %c0_22] : memref<1x8x128xf32, #tpu.memory_space<vmem>>, vector<1x8x128xf32>
      tpu.vector_store %arg4[%c0_20, %c0_21, %c0_22], %29 {strides = array<i32>} : memref<1x8x128xf32, #tpu.memory_space<vmem>>, vector<1x8x128xf32>,
      %cst_23 = arith.constant 0.000000e+00 : f32
      %31 = vector.broadcast %cst_23 : f32 to vector<1x8x128xf32>
      %c0_24 = arith.constant 0 : index
      %c0_25 = arith.constant 0 : index
      %c0_26 = arith.constant 0 : index
      %32 = vector.load %arg5[%c0_24, %c0_25, %c0_26] : memref<1x8x128xf32, #tpu.memory_space<vmem>>, vector<1x8x128xf32>
      tpu.vector_store %arg5[%c0_24, %c0_25, %c0_26], %31 {strides = array<i32>} : memref<1x8x128xf32, #tpu.memory_space<vmem>>, vector<1x8x128xf32>,
    } else {
    }
    %c0 = arith.constant 0 : index
    %c0_1 = arith.constant 0 : index
    %3 = vector.load %arg2[%c0, %c0_1] : memref<16x128xf32, #tpu.memory_space<vmem>>, vector<16x128xf32>
    %c0_2 = arith.constant 0 : index
    %c0_3 = arith.constant 0 : index
    %4 = vector.load %arg3[%c0_2, %c0_3] : memref<16x128xf32, #tpu.memory_space<vmem>>, vector<16x128xf32>
    %5 = arith.subf %3, %4 : vector<16x128xf32>
    %6 = math.absf %5 : vector<16x128xf32>
    %7 = math.absf %4 : vector<16x128xf32>
    %cst = arith.constant 9.99999997E-7 : f32
    %8 = vector.broadcast %cst : f32 to vector<16x128xf32>
    %9 = arith.maximumf %7, %8 : vector<16x128xf32>
    %10 = tpu.reciprocal %9 {approx = true} : vector<16x128xf32> -> vector<16x128xf32>
    %11 = arith.mulf %9, %10 : vector<16x128xf32>
    %cst_4 = arith.constant 2.000000e+00 : f32
    %12 = vector.broadcast %cst_4 : f32 to vector<16x128xf32>
    %13 = arith.subf %12, %11 : vector<16x128xf32>
    %14 = arith.mulf %10, %13 : vector<16x128xf32>
    %15 = arith.mulf %6, %14 : vector<16x128xf32>
    %16 = arith.mulf %5, %5 : vector<16x128xf32>
    %c0_5 = arith.constant 0 : index
    %c0_6 = arith.constant 0 : index
    %c0_7 = arith.constant 0 : index
    %17 = vector.load %arg4[%c0_5, %c0_6, %c0_7] : memref<1x8x128xf32, #tpu.memory_space<vmem>>, vector<1x8x128xf32>
    %18 = vector.shape_cast %15 : vector<16x128xf32> to vector<2x8x128xf32>
    %cst_8 = arith.constant dense<0.000000e+00> : vector<8x128xf32>
    %19 = vector.multi_reduction <add>, %18, %cst_8 [0] : vector<2x8x128xf32> to vector<8x128xf32>
    %20 = vector.shape_cast %19 : vector<8x128xf32> to vector<1x8x128xf32>
    %21 = arith.addf %17, %20 : vector<1x8x128xf32>
    %c0_9 = arith.constant 0 : index
    %c0_10 = arith.constant 0 : index
    %c0_11 = arith.constant 0 : index
    %22 = vector.load %arg4[%c0_9, %c0_10, %c0_11] : memref<1x8x128xf32, #tpu.memory_space<vmem>>, vector<1x8x128xf32>
    tpu.vector_store %arg4[%c0_9, %c0_10, %c0_11], %21 {strides = array<i32>} : memref<1x8x128xf32, #tpu.memory_space<vmem>>, vector<1x8x128xf32>,
    %c0_12 = arith.constant 0 : index
    %c0_13 = arith.constant 0 : index
    %c0_14 = arith.constant 0 : index
    %23 = vector.load %arg5[%c0_12, %c0_13, %c0_14] : memref<1x8x128xf32, #tpu.memory_space<vmem>>, vector<1x8x128xf32>
    %24 = vector.shape_cast %16 : vector<16x128xf32> to vector<2x8x128xf32>
    %cst_15 = arith.constant dense<0.000000e+00> : vector<8x128xf32>
    %25 = vector.multi_reduction <add>, %24, %cst_15 [0] : vector<2x8x128xf32> to vector<8x128xf32>
    %26 = vector.shape_cast %25 : vector<8x128xf32> to vector<1x8x128xf32>
    %27 = arith.addf %23, %26 : vector<1x8x128xf32>
    %c0_16 = arith.constant 0 : index
    %c0_17 = arith.constant 0 : index
    %c0_18 = arith.constant 0 : index
    %28 = vector.load %arg5[%c0_16, %c0_17, %c0_18] : memref<1x8x128xf32, #tpu.memory_space<vmem>>, vector<1x8x128xf32>
    tpu.vector_store %arg5[%c0_16, %c0_17, %c0_18], %27 {strides = array<i32>} : memref<1x8x128xf32, #tpu.memory_space<vmem>>, vector<1x8x128xf32>,
    return
  }
  func.func @transform_0(%arg0: i32, %arg1: i32) -> (i32, i32) {
    %c1_i32 = arith.constant 1 : i32
    %0 = arith.muli %arg0, %c1_i32 : i32
    %1 = arith.addi %0, %arg1 : i32
    %c0_i32 = arith.constant 0 : i32
    %c0_i32_0 = arith.constant 0 : i32
    return %1, %c0_i32 : i32, i32
  }
  func.func @transform_1(%arg0: i32, %arg1: i32) -> (i32, i32) {
    %c1_i32 = arith.constant 1 : i32
    %0 = arith.muli %arg0, %c1_i32 : i32
    %1 = arith.addi %0, %arg1 : i32
    %c0_i32 = arith.constant 0 : i32
    %c0_i32_0 = arith.constant 0 : i32
    return %1, %c0_i32 : i32, i32
  }
  func.func @transform_2(%arg0: i32, %arg1: i32) -> (i32, i32, i32) {
    %c0_i32 = arith.constant 0 : i32
    %c0_i32_0 = arith.constant 0 : i32
    %c0_i32_1 = arith.constant 0 : i32
    return %arg0, %c0_i32, %c0_i32_0 : i32, i32, i32
  }
  func.func @transform_3(%arg0: i32, %arg1: i32) -> (i32, i32, i32) {
    %c0_i32 = arith.constant 0 : i32
    %c0_i32_0 = arith.constant 0 : i32
    %c0_i32_1 = arith.constant 0 : i32
    return %arg0, %c0_i32, %c0_i32_0 : i32, i32, i32
  }
}

</mosaic_0001>

<llo_original>
// kernel: _losses_impl.1
$region0: #{_losses_impl.1}
  #allocation0 [shape = 'u32[]', space=smem, size = 0x4, offset = 0x4, fixed_abs, tag = 'smem constant byte address 0x4 - core index']
  #allocation1 [shape = 'u32[144,128]{1,0:T(1,128)}', space=vmem, size = 0x12000, scoped, tag = 'internal scratch']
  %s0 = inlined_call_operand.vmem [shape: f32[16,128], index: 0, kind: input, shape index: {}]
  %s1 = inlined_call_operand.vmem [shape: f32[16,128], index: 1, kind: input, shape index: {}]
  %s2 = inlined_call_operand.vmem [shape: f32[1,8,128], index: 2, kind: output, shape index: {0}]
  %s3 = inlined_call_operand.vmem [shape: f32[1,8,128], index: 3, kind: output, shape index: {1}]
  %4 = xla_tuple %s2, %s3
  %s5 = sld [smem:[#allocation0]]
  $region30: #{_losses_impl.1} parent=0
    _
  %s7 = ssub.s32 1, %s5
  %s8 = scalar_select 0, %s7, %s5
  // Predicated region
  $region2: #{_losses_impl.1} parent=0 // pred_check
    _
  $region3: #{_losses_impl.1} parent=0 // pred_check_branch
    %10 = sbr.rel (0) target = $region5
  $region4: #{_losses_impl.1} parent=0 // pred_region
    %s11 = sadd.s32 0, 0
    %s12 = smul.u32 2, %s11
    %p13 = scmp.lt.s32.totalorder %s12, 1
    %s14 = scalar_select %p13, %s12, 1
    %s15 = smul.addr %s14, 8
    %s16 = scalar_lea.vmem %s0, %s15
    %s17 = sadd.s32 0, 0
    %s18 = smul.u32 2, %s17
  $region5: #{_losses_impl.1} parent=0 // pred_fallthru
    _
  // Predicated region
  $region6: #{_losses_impl.1} parent=0 // pred_check
    _
  $region7: #{_losses_impl.1} parent=0 // pred_check_branch
    %20 = sbr.rel (0) target = $region9
  $region8: #{_losses_impl.1} parent=0 // pred_region
    %s21 = sadd.s32 0, 0
    %s22 = smul.u32 2, %s21
    %p23 = scmp.lt.s32.totalorder %s22, 1
    %s24 = scalar_select %p23, %s22, 1
    %s25 = smul.addr %s24, 8
    %s26 = scalar_lea.vmem %s1, %s25
    %s27 = sadd.s32 0, 0
    %s28 = smul.u32 2, %s27
  $region9: #{_losses_impl.1} parent=0 // pred_fallthru
    _
  %s29 = sadd.s32 0, 0
  %s30 = smul.u32 2, %s29
  %p31 = scmp.lt.s32.totalorder %s30, 1
  %s32 = scalar_select %p31, %s30, 1
  %s33 = smul.addr %s32, 8
  %s34 = scalar_lea.vmem %s0, %s33
  %s35 = sadd.s32 0, 0
  %s36 = smul.u32 2, %s35
  %p37 = scmp.lt.s32.totalorder %s36, 1
  %s38 = scalar_select %p37, %s36, 1
  %s39 = smul.addr %s38, 8
  %s40 = scalar_lea.vmem %s1, %s39
  %s41 = sadd.s32 0, 0
  %s42 = smul.u32 2, %s41
  %p43 = scmp.lt.s32.totalorder %s42, 1
  %s44 = scalar_select %p43, %s42, 1
  %s45 = smul.addr %s44, 8
  %s46 = scalar_lea.vmem %s0, %s45
  %s47 = sadd.s32 0, 0
  %s48 = smul.u32 2, %s47
  %s49 = sadd.s32 0, 0
  %s50 = smul.u32 2, %s49
  %p51 = scmp.lt.s32.totalorder %s50, 1
  %s52 = scalar_select %p51, %s50, 1
  %s53 = smul.addr %s52, 8
  %s54 = scalar_lea.vmem %s1, %s53
  %s55 = sadd.s32 0, 0
  %s56 = smul.u32 2, %s55
  %p57 = scmp.eq.s32.totalorder 0, 0
  // Predicated region
  $region10: #{_losses_impl.1} parent=0 // pred_check
    %p58 = pneg %p57
  $region11: #{_losses_impl.1} parent=0 // pred_check_branch
    %60 = sbr.rel (%p58) target = $region13
  $region12: #{_losses_impl.1} parent=0 // pred_region
    %61 = vst [vmem:[%s2] sm:$0xff] 0.0
    %62 = vst [vmem:[%s3] sm:$0xff] 0.0
  $region13: #{_losses_impl.1} parent=0 // pred_fallthru
    _
  %v63 = vld [vmem:[%s46] sm:$0xff]
  %v64 = vld [vmem:[%s46 + $0x8] sm:$0xff]
  %v65 = vld [vmem:[%s54] sm:$0xff]
  %v66 = vld [vmem:[%s54 + $0x8] sm:$0xff]
  %v67 = vsub.f32 %v63, %v65
  %v68 = vsub.f32 %v64, %v66
  %v69 = vand.u32 2147483647, %v67
  %v70 = vand.u32 2147483647, %v68
  %v71 = vand.u32 2147483647, %v65
  %v72 = vand.u32 2147483647, %v66
  %v73 = vmax.f32 %v71, 1e-06
  %v74 = vmax.f32 %v72, 1e-06
  %v75 = vrcp.pop %v73
  %v76 = vrcp.pop %v74
  %v77 = vmul.f32 %v73, %v75
  %v78 = vmul.f32 %v74, %v76
  %v79 = vsub.f32 2.0, %v77
  %v80 = vsub.f32 2.0, %v78
  %v81 = vmul.f32 %v75, %v79
  %v82 = vmul.f32 %v76, %v80
  %v83 = vmul.f32 %v69, %v81
  %v84 = vmul.f32 %v70, %v82
  %v85 = vmul.f32 %v67, %v67
  %v86 = vmul.f32 %v68, %v68
  %v87 = vld [vmem:[%s2] sm:$0xff]
  %v88 = vadd.f32 %v83, %v84
  %v89 = vadd.f32 %v87, %v88
  %90 = vst [vmem:[%s2] sm:$0xff] %v89
  %v91 = vld [vmem:[%s3] sm:$0xff]
  %v92 = vadd.f32 %v85, %v86
  %v93 = vadd.f32 %v91, %v92
  %94 = vst [vmem:[%s3] sm:$0xff] %v93
  // Predicated region
  $region14: #{_losses_impl.1} parent=0 // pred_check
    _
  $region15: #{_losses_impl.1} parent=0 // pred_check_branch
    %96 = sbr.rel (0) target = $region17
  $region16: #{_losses_impl.1} parent=0 // pred_region
    _
  $region17: #{_losses_impl.1} parent=0 // pred_fallthru
    _
  // Predicated region
  $region18: #{_losses_impl.1} parent=0 // pred_check
    _
  $region19: #{_losses_impl.1} parent=0 // pred_check_branch
    %98 = sbr.rel (0) target = $region21
  $region20: #{_losses_impl.1} parent=0 // pred_region
    _
  $region21: #{_losses_impl.1} parent=0 // pred_fallthru
    _
  // Predicated region
  $region22: #{_losses_impl.1} parent=0 // pred_check
    _
  $region23: #{_losses_impl.1} parent=0 // pred_check_branch
    %100 = sbr.rel (0) target = $region25
  $region24: #{_losses_impl.1} parent=0 // pred_region
    _
  $region25: #{_losses_impl.1} parent=0 // pred_fallthru
    _
  // Predicated region
  $region26: #{_losses_impl.1} parent=0 // pred_check
    _
  $region27: #{_losses_impl.1} parent=0 // pred_check_branch
    %102 = sbr.rel (0) target = $region29
  $region28: #{_losses_impl.1} parent=0 // pred_region
    _
  $region29: #{_losses_impl.1} parent=0 // pred_fallthru
    _

</llo_original>
